<compile_context>
chip_gen: v6e
topology: v6e:2x2x1
jax: 0.10.0
libtpu: 0.0.40
codegen_flags: <defaults>
</compile_context>

<pallas_src>
import math

import jax
import jax.numpy as jnp
from jax.experimental import pallas as pl
from jax.experimental.pallas import tpu as pltpu


def fused_kernel(x_ref, p_ref, o_ref):
    # x_ref: (B, C_in=2, L) f32 VMEM -- original PyTorch layout; the
    #        x1.permute(0, 2, 1) is folded into the indexing below.
    # p_ref: (8,) f32 SMEM -- [w00, w01, w10, w11, b0, b1, gamma, beta]
    # o_ref: (B, L, D_out=2) f32 VMEM
    x = x_ref[...].astype(jnp.float32)          # L stays on the lane axis throughout

    w00 = p_ref[0]
    w01 = p_ref[1]
    w10 = p_ref[2]
    w11 = p_ref[3]
    b0 = p_ref[4]
    b1 = p_ref[5]
    gamma = p_ref[6]
    beta = p_ref[7]

    x0 = x[:, 0, :]                             # (B, L) sublane slice, no cross-lane traffic
    x1c = x[:, 1, :]                            # (B, L)

    # v1 = x1.permute(0, 2, 1); v2 = linear(v1, W, b) * 2
    # Computed per output feature as scalar x vreg VPU MACs (no MXU, no relayout).
    row0 = (w00 * x0 + w01 * x1c + b0) * 2.0    # == v2[..., 0]
    row1 = (w10 * x0 + w11 * x1c + b1) * 2.0    # == v2[..., 1]

    # v3 = v2.unsqueeze(1): a single BN channel -> batch stats over ALL elements.
    B, _, L = x.shape
    n = jnp.float32(B * L * 2)
    s = jnp.sum(row0) + jnp.sum(row1)
    ss = jnp.sum(row0 * row0) + jnp.sum(row1 * row1)
    mean = s / n
    var = jnp.maximum(ss / n - mean * mean, 0.0)      # clamp FP cancellation
    inv_std = jax.lax.rsqrt(var + jnp.float32(1e-5))  # biased var (training-mode BN)
    scale = gamma * inv_std
    shift = beta - mean * scale

    # v6 = v2 + BN(v2) = v2 * (1 + scale) + shift
    out0 = row0 * (1.0 + scale) + shift         # (B, L)
    out1 = row1 * (1.0 + scale) + shift         # (B, L)

    # Single relayout: stack along sublanes (cheap placement) then swap the two
    # minor dims once to produce the required (B, L, D) order.
    out_bdl = jnp.stack([out0, out1], axis=1)                              # (B, D, L)
    o_ref[...] = jnp.transpose(out_bdl, (0, 2, 1)).astype(o_ref.dtype)     # (B, L, D)


def model_forward(x1, lin_w, lin_b, bn_gamma, bn_beta):
    """x1: (B, 2, L) float32 -- same layout as the PyTorch input.

    Returns (B, L, 2), matching Model.forward's output shape.
    """
    B, C_in, L = x1.shape
    D_out = lin_w.shape[0]
    assert C_in == 2 and D_out == 2, "kernel specialized for Linear(2, 2)"

    # Pack all tiny parameters into one SMEM vector (constant-foldable per weights).
    packed = jnp.concatenate(
        [lin_w.reshape(-1),        # w00, w01, w10, w11   (W[d, c], row-major)
         lin_b.reshape(-1),        # b0, b1
         bn_gamma[:1],             # gamma (single-channel interpretation)
         bn_beta[:1]]              # beta
    ).astype(jnp.float32)          # (8,)

    out = pl.pallas_call(
        fused_kernel,
        out_shape=jax.ShapeDtypeStruct((B, L, D_out), jnp.float32),
        in_specs=[
            pl.BlockSpec(memory_space=pltpu.MemorySpace.VMEM),   # x1 (permute folded in)
            pl.BlockSpec(memory_space=pltpu.MemorySpace.SMEM),   # packed scalars
        ],
        out_specs=pl.BlockSpec(memory_space=pltpu.MemorySpace.VMEM),
    )(x1, packed)

    return out


if __name__ == "__main__":
    key = jax.random.PRNGKey(0)
    k_x, k_w, k_b = jax.random.split(key, 3)

    # Input: (1, 2, 2) as in the reference script.
    B, C_in, L = 1, 2, 2
    D_out = 2
    x1 = jax.random.normal(k_x, (B, C_in, L), dtype=jnp.float32)

    # Deterministic Linear(2, 2) init (PyTorch-style uniform(-1/sqrt(in), 1/sqrt(in))).
    bound = 1.0 / math.sqrt(C_in)
    lin_w = jax.random.uniform(k_w, (D_out, C_in), jnp.float32, -bound, bound)
    lin_b = jax.random.uniform(k_b, (D_out,), jnp.float32, -bound, bound)

    # BatchNorm2d(num_features=2) default affine init: weight=1, bias=0.
    # Only element 0 is consumed (single-channel interpretation, see TODO above).
    bn_gamma = jnp.ones((2,), jnp.float32)
    bn_beta = jnp.zeros((2,), jnp.float32)

    out = model_forward(x1, lin_w, lin_b, bn_gamma, bn_beta)
    jax.block_until_ready(out)
    print("KERNEL_OK")
</pallas_src>

<mosaic_0001>
module attributes {stable_mosaic.version = 11 : i64} {
  func.func @fused_kernel(%arg0: memref<1x2x2xf32, #tpu.memory_space<vmem>>, %arg1: memref<8xf32, #tpu.memory_space<smem>>, %arg2: memref<1x2x2xf32, #tpu.memory_space<vmem>>) attributes {dimension_semantics = [], scalar_prefetch = 0 : i64, scratch_operands = 0 : i64, tpu.core_type = #tpu.core_type<tc>} {
    %c0 = arith.constant 0 : index
    %c0_0 = arith.constant 0 : index
    %c0_1 = arith.constant 0 : index
    %0 = vector.load %arg0[%c0, %c0_0, %c0_1] : memref<1x2x2xf32, #tpu.memory_space<vmem>>, vector<1x2x2xf32>
    %c0_2 = arith.constant 0 : index
    %1 = memref.load %arg1[%c0_2] : memref<8xf32, #tpu.memory_space<smem>>
    %c1 = arith.constant 1 : index
    %2 = memref.load %arg1[%c1] : memref<8xf32, #tpu.memory_space<smem>>
    %c2 = arith.constant 2 : index
    %3 = memref.load %arg1[%c2] : memref<8xf32, #tpu.memory_space<smem>>
    %c3 = arith.constant 3 : index
    %4 = memref.load %arg1[%c3] : memref<8xf32, #tpu.memory_space<smem>>
    %c4 = arith.constant 4 : index
    %5 = memref.load %arg1[%c4] : memref<8xf32, #tpu.memory_space<smem>>
    %c5 = arith.constant 5 : index
    %6 = memref.load %arg1[%c5] : memref<8xf32, #tpu.memory_space<smem>>
    %c6 = arith.constant 6 : index
    %7 = memref.load %arg1[%c6] : memref<8xf32, #tpu.memory_space<smem>>
    %c7 = arith.constant 7 : index
    %8 = memref.load %arg1[%c7] : memref<8xf32, #tpu.memory_space<smem>>
    %9 = vector.extract_strided_slice %0 {offsets = [0, 0, 0], sizes = [1, 1, 2], strides = [1, 1, 1]} : vector<1x2x2xf32> to vector<1x1x2xf32>
    %10 = vector.shape_cast %9 : vector<1x1x2xf32> to vector<1x2xf32>
    %11 = vector.extract_strided_slice %0 {offsets = [0, 1, 0], sizes = [1, 1, 2], strides = [1, 1, 1]} : vector<1x2x2xf32> to vector<1x1x2xf32>
    %12 = vector.shape_cast %11 : vector<1x1x2xf32> to vector<1x2xf32>
    %13 = vector.broadcast %1 : f32 to vector<1x2xf32>
    %14 = arith.mulf %13, %10 : vector<1x2xf32>
    %15 = vector.broadcast %2 : f32 to vector<1x2xf32>
    %16 = arith.mulf %15, %12 : vector<1x2xf32>
    %17 = arith.addf %14, %16 : vector<1x2xf32>
    %18 = vector.broadcast %5 : f32 to vector<1x2xf32>
    %19 = arith.addf %17, %18 : vector<1x2xf32>
    %cst = arith.constant 2.000000e+00 : f32
    %20 = vector.broadcast %cst : f32 to vector<1x2xf32>
    %21 = arith.mulf %19, %20 : vector<1x2xf32>
    %22 = vector.broadcast %3 : f32 to vector<1x2xf32>
    %23 = arith.mulf %22, %10 : vector<1x2xf32>
    %24 = vector.broadcast %4 : f32 to vector<1x2xf32>
    %25 = arith.mulf %24, %12 : vector<1x2xf32>
    %26 = arith.addf %23, %25 : vector<1x2xf32>
    %27 = vector.broadcast %6 : f32 to vector<1x2xf32>
    %28 = arith.addf %26, %27 : vector<1x2xf32>
    %cst_3 = arith.constant 2.000000e+00 : f32
    %29 = vector.broadcast %cst_3 : f32 to vector<1x2xf32>
    %30 = arith.mulf %28, %29 : vector<1x2xf32>
    %31 = vector.shape_cast %21 : vector<1x2xf32> to vector<1x1x2xf32>
    %cst_4 = arith.constant dense<0.000000e+00> : vector<1xf32>
    %32 = vector.multi_reduction <add>, %31, %cst_4 [1, 2] : vector<1x1x2xf32> to vector<1xf32>
    %33 = vector.shape_cast %32 : vector<1xf32> to vector<1x1x1xf32>
    %34 = vector.extract %33[0, 0, 0] : f32 from vector<1x1x1xf32>
    %35 = vector.shape_cast %30 : vector<1x2xf32> to vector<1x1x2xf32>
    %cst_5 = arith.constant dense<0.000000e+00> : vector<1xf32>
    %36 = vector.multi_reduction <add>, %35, %cst_5 [1, 2] : vector<1x1x2xf32> to vector<1xf32>
    %37 = vector.shape_cast %36 : vector<1xf32> to vector<1x1x1xf32>
    %38 = vector.extract %37[0, 0, 0] : f32 from vector<1x1x1xf32>
    %39 = arith.addf %34, %38 : f32
    %40 = arith.mulf %21, %21 : vector<1x2xf32>
    %41 = vector.shape_cast %40 : vector<1x2xf32> to vector<1x1x2xf32>
    %cst_6 = arith.constant dense<0.000000e+00> : vector<1xf32>
    %42 = vector.multi_reduction <add>, %41, %cst_6 [1, 2] : vector<1x1x2xf32> to vector<1xf32>
    %43 = vector.shape_cast %42 : vector<1xf32> to vector<1x1x1xf32>
    %44 = vector.extract %43[0, 0, 0] : f32 from vector<1x1x1xf32>
    %45 = arith.mulf %30, %30 : vector<1x2xf32>
    %46 = vector.shape_cast %45 : vector<1x2xf32> to vector<1x1x2xf32>
    %cst_7 = arith.constant dense<0.000000e+00> : vector<1xf32>
    %47 = vector.multi_reduction <add>, %46, %cst_7 [1, 2] : vector<1x1x2xf32> to vector<1xf32>
    %48 = vector.shape_cast %47 : vector<1xf32> to vector<1x1x1xf32>
    %49 = vector.extract %48[0, 0, 0] : f32 from vector<1x1x1xf32>
    %50 = arith.addf %44, %49 : f32
    %cst_8 = arith.constant 4.000000e+00 : f32
    %51 = arith.divf %39, %cst_8 : f32
    %cst_9 = arith.constant 4.000000e+00 : f32
    %52 = arith.divf %50, %cst_9 : f32
    %53 = arith.mulf %51, %51 : f32
    %54 = arith.subf %52, %53 : f32
    %cst_10 = arith.constant 0.000000e+00 : f32
    %55 = arith.maximumf %54, %cst_10 : f32
    %cst_11 = arith.constant 9.99999974E-6 : f32
    %56 = arith.addf %55, %cst_11 : f32
    %57 = math.rsqrt %56 : f32
    %58 = arith.mulf %7, %57 : f32
    %59 = arith.mulf %51, %58 : f32
    %60 = arith.subf %8, %59 : f32
    %cst_12 = arith.constant 1.000000e+00 : f32
    %61 = arith.addf %cst_12, %58 : f32
    %62 = vector.broadcast %61 : f32 to vector<1x2xf32>
    %63 = arith.mulf %21, %62 : vector<1x2xf32>
    %64 = vector.broadcast %60 : f32 to vector<1x2xf32>
    %65 = arith.addf %63, %64 : vector<1x2xf32>
    %cst_13 = arith.constant 1.000000e+00 : f32
    %66 = arith.addf %cst_13, %58 : f32
    %67 = vector.broadcast %66 : f32 to vector<1x2xf32>
    %68 = arith.mulf %30, %67 : vector<1x2xf32>
    %69 = vector.broadcast %60 : f32 to vector<1x2xf32>
    %70 = arith.addf %68, %69 : vector<1x2xf32>
    %71 = vector.shape_cast %65 : vector<1x2xf32> to vector<1x1x2xf32>
    %72 = vector.shape_cast %70 : vector<1x2xf32> to vector<1x1x2xf32>
    %73 = tpu.concatenate %71, %72 in 1 : vector<1x1x2xf32>, vector<1x1x2xf32> -> vector<1x2x2xf32>
    %74 = tpu.transpose %73, [0, 2, 1] : vector<1x2x2xf32> -> vector<1x2x2xf32>
    %c0_14 = arith.constant 0 : index
    %c0_15 = arith.constant 0 : index
    %c0_16 = arith.constant 0 : index
    %75 = vector.load %arg2[%c0_14, %c0_15, %c0_16] : memref<1x2x2xf32, #tpu.memory_space<vmem>>, vector<1x2x2xf32>
    tpu.vector_store %arg2[%c0_14, %c0_15, %c0_16], %74 {strides = array<i32>} : memref<1x2x2xf32, #tpu.memory_space<vmem>>, vector<1x2x2xf32>,
    return
  }
}

</mosaic_0001>

<llo_original>
// kernel: tpu_custom_call.1
$region0: #{tpu_custom_call.1}
  #allocation0 [shape = 'u32[]', space=smem, size = 0x4, offset = 0x4, fixed_abs, tag = 'smem constant byte address 0x4 - core index']
  #allocation1 [shape = 'u32[144,128]{1,0:T(1,128)}', space=vmem, size = 0x12000, scoped, tag = 'internal scratch']
  %s0 = inlined_call_operand.hbm [shape: f32[1,2,2], index: 0, kind: input, shape index: {}]
  %s1 = inlined_call_operand.vmem [shape: f32[8], index: 1, kind: input, shape index: {}]
  %s2 = inlined_call_operand.hbm [shape: f32[1,2,2], index: 2, kind: output, shape index: {}]
  %s3 = sld [smem:[#allocation0]]
  $region26: #{tpu_custom_call.1} parent=0
    _
  %s5 = ssub.s32 1, %s3
  %s6 = scalar_select 0, %s5, %s3
  $region1: #{tpu_custom_call.1} parent=0
    #allocation2 [shape = 'u8[1024]{0}', space=vmem, size = 0x400, scoped, tag = 'input window, operand 0, single buffered']
    #allocation3 [shape = 's32[1]{0}', space=sflag, size = 0x4, scoped, tag = 'scoped memory for tpu_custom_call.1']
    #allocation4 [shape = 's32[1]{0}', space=sflag, size = 0x4, scoped, tag = 'scoped memory for tpu_custom_call.1']
    #allocation5 [shape = 's32[1]{0}', space=sflag, size = 0x4, scoped, tag = 'scoped memory for tpu_custom_call.1']
    #allocation6 [shape = 'u8[512]{0}', space=smem, size = 0x200, scoped, tag = 'input window, operand 1, single buffered']
    #allocation7 [shape = 'u8[1024]{0}', space=vmem, size = 0x400, scoped, tag = 'output window, operand 0, single buffered']
    %7 = vsyncpa [#allocation3], 0
    %8 = vsyncpa [#allocation5], 0
    %9 = vsyncpa [#allocation4], 0
    // Predicated region
    $region2: #{tpu_custom_call.1} parent=1 // pred_check
      _
    $region3: #{tpu_custom_call.1} parent=1 // pred_check_branch
      %11 = sbr.rel (0) target = $region5
    $region4: #{tpu_custom_call.1} parent=1 // pred_region
      %s13 = ssub.s32 32, 32
      %14 = vsyncadd [#allocation3], %s13
      %s16 = sshll.u32 [#allocation2], 4
      %s17 = int_to_ptr.vmem [resolvable:$true] %s16
      %19 = dma.hbm_to_vmem [thread:$0]  %s0, 32, %s17, [#allocation3]
    $region5: #{tpu_custom_call.1} parent=1 // pred_fallthru
      _
    // Predicated region
    $region6: #{tpu_custom_call.1} parent=1 // pred_check
      _
    $region7: #{tpu_custom_call.1} parent=1 // pred_check_branch
      %21 = sbr.rel (0) target = $region9
    $region8: #{tpu_custom_call.1} parent=1 // pred_region
      %s23 = ssub.s32 16, 16
      %24 = vsyncadd [#allocation5], %s23
      %s26 = sshll.u32 %s1, 4
      %s27 = int_to_ptr.vmem [resolvable:$true] %s26
      %29 = dma.vmem_to_smem %s27, 16, [#allocation6], [#allocation5]
    $region9: #{tpu_custom_call.1} parent=1 // pred_fallthru
      _
    // Predicated region
    $region10: #{tpu_custom_call.1} parent=1 // pred_check
      _
    $region11: #{tpu_custom_call.1} parent=1 // pred_check_branch
      %31 = sbr.rel (0) target = $region13
    $region12: #{tpu_custom_call.1} parent=1 // pred_region
      %32 = dma.done [#allocation3], 32
    $region13: #{tpu_custom_call.1} parent=1 // pred_fallthru
      _
    // Predicated region
    $region14: #{tpu_custom_call.1} parent=1 // pred_check
      _
    $region15: #{tpu_custom_call.1} parent=1 // pred_check_branch
      %34 = sbr.rel (0) target = $region17
    $region16: #{tpu_custom_call.1} parent=1 // pred_region
      %35 = dma.done [#allocation5], 16
    $region17: #{tpu_custom_call.1} parent=1 // pred_fallthru
      _
    %36 = sfence
    %v37 = vld [vmem:[#allocation2] sm:$0x3]
    %s38 = sld [smem:[#allocation6]]
    %s39 = sld [smem:[#allocation6 + $0x1]]
    %s40 = sld [smem:[#allocation6 + $0x2]]
    %s41 = sld [smem:[#allocation6 + $0x3]]
    %s42 = sld [smem:[#allocation6 + $0x4]]
    %s43 = sld [smem:[#allocation6 + $0x5]]
    %s44 = sld [smem:[#allocation6 + $0x6]]
    %s45 = sld [smem:[#allocation6 + $0x7]]
    %v46 = vstv %s38
    %v47 = vmul.f32 %v46, %v37
    %v48 = vstv %s39
    %v49 = vmul.f32 %v48, %v37
    %v51 = vrot.slane %v49, 1
    %v53 = vadd.f32 %v47, %v51
    %v54 = vstv %s42
    %v55 = vadd.f32 %v53, %v54
    %v56 = vmul.f32 %v55, 2.0
    %v57 = vstv %s40
    %v58 = vmul.f32 %v57, %v37
    %v59 = vstv %s41
    %v60 = vmul.f32 %v59, %v37
    %v62 = vrot.slane %v60, 1
    %v64 = vadd.f32 %v58, %v62
    %v65 = vstv %s43
    %v66 = vadd.f32 %v64, %v65
    %v67 = vmul.f32 %v66, 2.0
    %vm68 = vcmask 8192
    %v69 = vsel %vm68, %v56, 0.0
    %70 = vadd.xlane.f32.xlu0 %v69
    %v71 = vpop.xlane.xlu0 %70
    %v72 = vrot.slane %v71, 4
    %v73 = vadd.f32 %v71, %v72
    %v74 = vrot.slane %v73, 2
    %v75 = vadd.f32 %v73, %v74
    %v76 = vrot.slane %v75, 1
    %v77 = vadd.f32 %v75, %v76
    %s78 = vtos %v77
    %v79 = vsel %vm68, %v67, 0.0
    %80 = vadd.xlane.f32.xlu0 %v79
    %v81 = vpop.xlane.xlu0 %80
    %v82 = vrot.slane %v81, 4
    %v83 = vadd.f32 %v81, %v82
    %v84 = vrot.slane %v83, 2
    %v85 = vadd.f32 %v83, %v84
    %v86 = vrot.slane %v85, 1
    %v87 = vadd.f32 %v85, %v86
    %s88 = vtos %v87
    %s89 = sadd.f32 %s78, %s88
    %v90 = vmul.f32 %v56, %v56
    %v91 = vsel %vm68, %v90, 0.0
    %92 = vadd.xlane.f32.xlu0 %v91
    %v93 = vpop.xlane.xlu0 %92
    %v94 = vrot.slane %v93, 4
    %v95 = vadd.f32 %v93, %v94
    %v96 = vrot.slane %v95, 2
    %v97 = vadd.f32 %v95, %v96
    %v98 = vrot.slane %v97, 1
    %v99 = vadd.f32 %v97, %v98
    %s100 = vtos %v99
    %v101 = vmul.f32 %v67, %v67
    %v102 = vsel %vm68, %v101, 0.0
    %103 = vadd.xlane.f32.xlu0 %v102
    %v104 = vpop.xlane.xlu0 %103
    %v105 = vrot.slane %v104, 4
    %v106 = vadd.f32 %v104, %v105
    %v107 = vrot.slane %v106, 2
    %v108 = vadd.f32 %v106, %v107
    %v109 = vrot.slane %v108, 1
    %v110 = vadd.f32 %v108, %v109
    %s111 = vtos %v110
    %s112 = sadd.f32 %s100, %s111
    %v113 = vrcp.pop 4.0
    %s114 = vtos %v113
    %s115 = smul.f32 %s89, %s114
    %v116 = vrcp.pop 4.0
    %s117 = vtos %v116
    %s118 = smul.f32 %s112, %s117
    %s119 = smul.f32 %s115, %s115
    %s120 = ssub.f32 %s118, %s119
    %s121 = smax.f32 %s120, 0.0
    %s122 = sadd.f32 %s121, 1e-05
    %v123 = vstv %s122
    %v124 = vrsqrt.pop %v123
    %s125 = vtos %v124
    %s126 = smul.f32 %s44, %s125
    %s127 = smul.f32 %s115, %s126
    %s128 = ssub.f32 %s45, %s127
    %s129 = sadd.f32 %s126, 1.0
    %v130 = vstv %s129
    %v131 = vmul.f32 %v56, %v130
    %v132 = vstv %s128
    %v133 = vadd.f32 %v131, %v132
    %v134 = vmul.f32 %v67, %v130
    %v135 = vadd.f32 %v134, %v132
    %v137 = vrot.slane %v135, 7
    %vm139 = vcmask 1040384
    %v140 = vsel %vm139, %v133, %v137
    %141 = vxpose.xlu0.b32.start [1/16] %v140, 128
    %142 = vxpose.xlu0.b32.cont [2/16] 0.0, 128
    %143 = vxpose.xlu0.b32.cont [3/16] 0.0, 128
    %144 = vxpose.xlu0.b32.cont [4/16] 0.0, 128
    %145 = vxpose.xlu0.b32.cont [5/16] 0.0, 128
    %146 = vxpose.xlu0.b32.cont [6/16] 0.0, 128
    %147 = vxpose.xlu0.b32.cont [7/16] 0.0, 128
    %148 = vxpose.xlu0.b32.cont [8/16] 0.0, 128
    %149 = vxpose.xlu0.b32.cont [9/16] 0.0, 128
    %150 = vxpose.xlu0.b32.cont [10/16] 0.0, 128
    %151 = vxpose.xlu0.b32.cont [11/16] 0.0, 128
    %152 = vxpose.xlu0.b32.cont [12/16] 0.0, 128
    %153 = vxpose.xlu0.b32.cont [13/16] 0.0, 128
    %154 = vxpose.xlu0.b32.cont [14/16] 0.0, 128
    %155 = vxpose.xlu0.b32.cont [15/16] 0.0, 128
    %156 = vxpose.xlu0.b32.end [16/16] 0.0, 128
    %v157 = vpop.trf.xlu0
    %v158 = vpop.trf.xlu0
    %v159 = vpop.trf.xlu0
    %v160 = vpop.trf.xlu0
    %v161 = vpop.trf.xlu0
    %v162 = vpop.trf.xlu0
    %v163 = vpop.trf.xlu0
    %v164 = vpop.trf.xlu0
    %v165 = vpop.trf.xlu0
    %v166 = vpop.trf.xlu0
    %v167 = vpop.trf.xlu0
    %v168 = vpop.trf.xlu0
    %v169 = vpop.trf.xlu0
    %v170 = vpop.trf.xlu0
    %v171 = vpop.trf.xlu0
    %v172 = vpop.trf.xlu0
    %vm173 = vcmask 9216
    %174 = vst.msk [vmem:[#allocation7] sm:$0x3] %vm173, %v157
    // Predicated region
    $region18: #{tpu_custom_call.1} parent=1 // pred_check
      _
    $region19: #{tpu_custom_call.1} parent=1 // pred_check_branch
      %176 = sbr.rel (0) target = $region21
    $region20: #{tpu_custom_call.1} parent=1 // pred_region
      %s178 = ssub.s32 32, 32
      %179 = vsyncadd [#allocation4], %s178
      %s181 = sshll.u32 [#allocation7], 4
      %s182 = int_to_ptr.vmem [resolvable:$true] %s181
      %184 = dma.vmem_to_hbm [thread:$0]  %s182, 32, %s2, [#allocation4]
    $region21: #{tpu_custom_call.1} parent=1 // pred_fallthru
      _
    // Predicated region
    $region22: #{tpu_custom_call.1} parent=1 // pred_check
      _
    $region23: #{tpu_custom_call.1} parent=1 // pred_check_branch
      %186 = sbr.rel (0) target = $region25
    $region24: #{tpu_custom_call.1} parent=1 // pred_region
      %187 = dma.done [#allocation4], 32
    $region25: #{tpu_custom_call.1} parent=1 // pred_fallthru
      _
    %188 = vsyncpa [#allocation3], 1
    %189 = vsyncpa [#allocation4], 1
    %190 = vsyncpa [#allocation5], 1

</llo_original>
